<compile_context>
chip_gen: v5e
topology: v5e:2x2
jax: 0.10.0
libtpu: 0.0.40
codegen_flags: <defaults>
</compile_context>

<pallas_src>
import functools

import jax
import jax.numpy as jnp
from jax.experimental import pallas as pl
from jax.experimental.pallas import tpu as pltpu


def _patch_embed_kernel(x_ref, w_ref, b_ref, o_ref):
    # x_ref: (tm, K)  streamed patch-feature tile (compute dtype)
    # w_ref: (K, H)   resident W^T (compute dtype)
    # b_ref: (1, H)   resident f32 bias
    # o_ref: (tm, H)  output tile (out dtype)
    acc = jnp.dot(x_ref[...], w_ref[...], preferred_element_type=jnp.float32)
    o_ref[...] = (acc + b_ref[...]).astype(o_ref.dtype)


def _cdiv(a, b):
    return (a + b - 1) // b


def _round_up(x, m):
    return ((x + m - 1) // m) * m


def _vmem_capacity_bytes() -> int:
    """Physical VMEM, with a conservative fallback (64 MiB = v7x)."""
    try:
        cap = getattr(pltpu.get_tpu_info(), "vmem_capacity_bytes", None)
        if cap:
            return int(cap)
    except Exception:
        pass
    return 64 * 1024 * 1024


def _derive_tile_m(M, K, H, x_bytes, out_bytes, vmem_budget, cap):
    """Pick tm from a VMEM budget; never a tiny-tile cliff, never an OOM block.

    Budget model (padded to (8,128) VMEM tiles):
      2 * tm * (Kpad * x_bytes + Hpad * out_bytes)   # double-buffered x + out
      + 2 * (Kpad8 * Hpad * x_bytes + 8 * Hpad * 4)  # resident W^T + bias
    """
    kpad = _round_up(K, 128)
    hpad = _round_up(H, 128)
    resident = 2 * (_round_up(K, 8) * hpad * x_bytes + 8 * hpad * 4)
    per_row = 2 * (kpad * x_bytes + hpad * out_bytes)
    avail = max(vmem_budget - resident - (2 << 20), per_row * 8)
    tm = min(int(cap), int(avail // per_row))

    # Grid-step shaping: >=8 steps for v7x's two TensorCores, else >=2 steps
    # for DMA/compute overlap — but only if tiles can stay >= 512 rows
    # (smaller tiles fall off the HBM roofline per the tiled-add data).
    for steps in (8, 2):
        cand = _round_up(_cdiv(M, steps), 8)
        if cand >= 512:
            tm = min(tm, cand)
            break

    tm = max(8, (tm // 8) * 8)
    if tm >= M:
        tm = M  # single full block: always layout-legal, and it fit the budget
    return int(tm)


@functools.partial(
    jax.jit,
    static_argnums=(3,),
    static_argnames=("compute_dtype", "out_dtype", "tile_m_cap"),
)
def patch_embed(x, weight, bias, patch_size, *, compute_dtype=None,
                out_dtype=None, tile_m_cap=2048):
    """PatchEmbed forward (sin_emb=0, split_c=False).

    x:      (B, C, S)  -- '... d s' layout of the PyTorch module
    weight: (H, P*C)   -- nn.Linear(patch_size*in_channels, hidden_size).weight
    bias:   (H,)
    compute_dtype: dtype for x/W inside the matmul (default: x.dtype; pass
                   jnp.bfloat16 to halve input HBM bytes, f32 accumulation kept).
    out_dtype:     output dtype (default: x.dtype; pass jnp.bfloat16 when the
                   downstream DiT is bf16 — halves the dominant writeback stream).
    returns (B, N, H) with N = S // patch_size.
    """
    B, C, S = x.shape
    H, K = weight.shape
    P = int(patch_size)
    if K != P * C:
        raise ValueError(f"weight in_features {K} != patch_size*in_channels {P * C}")
    if S % P != 0:
        raise ValueError(f"sequence length {S} not divisible by patch_size {P}")
    N = S // P
    M = B * N

    cdt = jnp.dtype(compute_dtype) if compute_dtype is not None else x.dtype
    odt = jnp.dtype(out_dtype) if out_dtype is not None else x.dtype

    # Patchify glue mirroring the einops rearranges; feature index = g*C + c.
    # This is a real transpose (one small XLA pass over x, M*K elements).
    xf = jnp.transpose(x, (0, 2, 1)).reshape(M, K).astype(cdt)
    w_t = jnp.transpose(weight).astype(cdt)          # (K, H), resident in VMEM
    b2 = bias.astype(jnp.float32).reshape(1, H)      # f32 epilogue add (v5e-safe)

    vmem_cap = _vmem_capacity_bytes()
    tm = _derive_tile_m(
        M, K, H,
        x_bytes=jnp.dtype(cdt).itemsize,
        out_bytes=jnp.dtype(odt).itemsize,
        vmem_budget=int(vmem_cap * 0.70),
        cap=tile_m_cap,
    )
    grid = (_cdiv(M, tm),)  # ragged last block: reads clamped, stores masked

    cost = pl.CostEstimate(
        flops=2 * M * K * H,
        transcendentals=0,
        bytes_accessed=(M * K * jnp.dtype(cdt).itemsize      # x stream
                        + K * H * jnp.dtype(cdt).itemsize    # resident weight
                        + H * 4                              # bias
                        + M * H * jnp.dtype(odt).itemsize),  # output writeback
    )

    out = pl.pallas_call(
        _patch_embed_kernel,
        out_shape=jax.ShapeDtypeStruct((M, H), odt),
        grid=grid,
        in_specs=[
            pl.BlockSpec((tm, K), lambda i: (i, 0)),   # streamed, double-buffered
            pl.BlockSpec((K, H), lambda i: (0, 0)),    # resident W^T
            pl.BlockSpec((1, H), lambda i: (0, 0)),    # resident bias
        ],
        # Full-H output block: lane-dense stores whenever H % 128 == 0.
        out_specs=pl.BlockSpec((tm, H), lambda i: (i, 0)),
        compiler_params=pltpu.CompilerParams(
            dimension_semantics=("parallel",),          # shards M over v7x's 2 TCs
            vmem_limit_bytes=int(vmem_cap * 0.85),      # above default scoped limit
        ),
        cost_estimate=cost,
    )(xf, w_t, b2)
    return out.reshape(B, N, H)


def patch_embed_ref(x, weight, bias, patch_size):
    B, C, S = x.shape
    N = S // patch_size
    xp = jnp.transpose(x, (0, 2, 1)).reshape(B, N, patch_size * C)
    return jnp.einsum("bnk,hk->bnh", xp, weight) + bias


if __name__ == "__main__":
    key = jax.random.PRNGKey(0)

    # Case 1: tiny shapes consistent with the module; exact f32 path.
    B, C, S, P, H = 2, 4, 16, 4, 32
    N = S // P
    k1, k2, k3, key = jax.random.split(key, 4)
    x1 = jax.random.normal(k1, (B, C, S), dtype=jnp.float32)
    w1 = jax.random.normal(k2, (H, P * C), dtype=jnp.float32) * 0.02
    b1 = jax.random.normal(k3, (H,), dtype=jnp.float32) * 0.01

    ref1 = patch_embed_ref(x1, w1, b1, P)
    out1 = jax.block_until_ready(patch_embed(x1, w1, b1, P))
    assert out1.shape == (B, N, H), out1.shape
    assert out1.dtype == x1.dtype
    assert jnp.allclose(out1, ref1, atol=1e-5, rtol=1e-5), "f32 mismatch vs reference"

    # Case 2: ragged M (B*N = 15 not a tile multiple; tile_m_cap=8 forces a
    # 2-step grid with a masked last block), lane-dense H=128, and the bf16
    # compute + bf16 output fast path (for a bf16 downstream DiT).
    B2, C2, S2, P2, H2 = 3, 4, 20, 4, 128
    N2 = S2 // P2
    k1, k2, k3, key = jax.random.split(key, 4)
    x2 = jax.random.normal(k1, (B2, C2, S2), dtype=jnp.float32)
    w2 = jax.random.normal(k2, (H2, P2 * C2), dtype=jnp.float32) * 0.02
    b2 = jax.random.normal(k3, (H2,), dtype=jnp.float32) * 0.01

    ref2 = patch_embed_ref(x2, w2, b2, P2)
    out2 = jax.block_until_ready(
        patch_embed(x2, w2, b2, P2, compute_dtype=jnp.bfloat16,
                    out_dtype=jnp.bfloat16, tile_m_cap=8))
    assert out2.shape == (B2, N2, H2), out2.shape
    assert out2.dtype == jnp.bfloat16
    assert jnp.allclose(out2.astype(jnp.float32), ref2, atol=3e-2, rtol=3e-2), \
        "bf16 mismatch vs reference"

    print("KERNEL_OK")
</pallas_src>

<mosaic_0001>
module attributes {stable_mosaic.version = 11 : i64} {
  func.func @_patch_embed_kernel(%arg0: i32, %arg1: memref<8x16xf32, #tpu.memory_space<vmem>>, %arg2: memref<16x32xf32, #tpu.memory_space<vmem>>, %arg3: memref<1x32xf32, #tpu.memory_space<vmem>>, %arg4: memref<8x32xf32, #tpu.memory_space<vmem>>) attributes {dimension_semantics = [#tpu.dimension_semantics<parallel>], iteration_bounds = array<i64: 1>, scalar_prefetch = 0 : i64, scratch_operands = 0 : i64, tpu.core_type = #tpu.core_type<tc>, window_params = [{transform_indices = @transform_0, window_bounds = array<i64: 8, 16>}, {pipeline_mode = #tpu.pipeline_mode<synchronous>, transform_indices = @transform_1, window_bounds = array<i64: 16, 32>}, {pipeline_mode = #tpu.pipeline_mode<synchronous>, transform_indices = @transform_2, window_bounds = array<i64: 1, 32>}, {transform_indices = @transform_3, window_bounds = array<i64: 8, 32>}]} {
    %c0 = arith.constant 0 : index
    %c0_0 = arith.constant 0 : index
    %0 = vector.load %arg1[%c0, %c0_0] : memref<8x16xf32, #tpu.memory_space<vmem>>, vector<8x16xf32>
    %c0_1 = arith.constant 0 : index
    %c0_2 = arith.constant 0 : index
    %1 = vector.load %arg2[%c0_1, %c0_2] : memref<16x32xf32, #tpu.memory_space<vmem>>, vector<16x32xf32>
    %cst = arith.constant dense<0.000000e+00> : vector<8x32xf32>
    %2 = tpu.matmul %0, %1, %cst {dimension_numbers = #tpu.dot_dimension_numbers<[1], [0], [0], [1], [0, 0, 1, 1], [], []>} : vector<8x16xf32>, vector<16x32xf32>, vector<8x32xf32> -> vector<8x32xf32>
    %c0_3 = arith.constant 0 : index
    %c0_4 = arith.constant 0 : index
    %3 = vector.load %arg3[%c0_3, %c0_4] : memref<1x32xf32, #tpu.memory_space<vmem>>, vector<1x32xf32>
    %4 = vector.broadcast %3 : vector<1x32xf32> to vector<8x32xf32>
    %5 = arith.addf %2, %4 : vector<8x32xf32>
    %c0_5 = arith.constant 0 : index
    %c0_6 = arith.constant 0 : index
    %6 = vector.load %arg4[%c0_5, %c0_6] : memref<8x32xf32, #tpu.memory_space<vmem>>, vector<8x32xf32>
    tpu.vector_store %arg4[%c0_5, %c0_6], %5 {strides = array<i32>} : memref<8x32xf32, #tpu.memory_space<vmem>>, vector<8x32xf32>,
    return
  }
  func.func @transform_0(%arg0: i32) -> (i32, i32) {
    %c0_i32 = arith.constant 0 : i32
    %c0_i32_0 = arith.constant 0 : i32
    return %arg0, %c0_i32 : i32, i32
  }
  func.func @transform_1(%arg0: i32) -> (i32, i32) {
    %c0_i32 = arith.constant 0 : i32
    %c0_i32_0 = arith.constant 0 : i32
    %c0_i32_1 = arith.constant 0 : i32
    return %c0_i32, %c0_i32_0 : i32, i32
  }
  func.func @transform_2(%arg0: i32) -> (i32, i32) {
    %c0_i32 = arith.constant 0 : i32
    %c0_i32_0 = arith.constant 0 : i32
    %c0_i32_1 = arith.constant 0 : i32
    return %c0_i32, %c0_i32_0 : i32, i32
  }
  func.func @transform_3(%arg0: i32) -> (i32, i32) {
    %c0_i32 = arith.constant 0 : i32
    %c0_i32_0 = arith.constant 0 : i32
    return %arg0, %c0_i32 : i32, i32
  }
}

</mosaic_0001>

<llo_original>
// kernel: patch_embed.1
$region0: #{patch_embed.1}
  #allocation0 [shape = 'u32[]', space=smem, size = 0x4, offset = 0x4, fixed_abs, tag = 'smem constant byte address 0x4 - core index']
  #allocation1 [shape = 'u32[72,128]{1,0:T(1,128)}', space=vmem, size = 0x9000, scoped, tag = 'internal scratch']
  %s0 = inlined_call_operand.vmem [shape: f32[8,16], index: 0, kind: input, shape index: {}]
  %s1 = inlined_call_operand.vmem [shape: f32[16,32], index: 1, kind: input, shape index: {}]
  %s2 = inlined_call_operand.vmem [shape: f32[1,32], index: 2, kind: input, shape index: {}]
  %s3 = inlined_call_operand.hbm [shape: f32[8,32], index: 3, kind: output, shape index: {}]
  %s4 = sld [smem:[#allocation0]]
  $region22: #{patch_embed.1} parent=0
    _
  %s6 = ssub.s32 1, %s4
  %s7 = scalar_select 0, %s6, %s4
  $region1: #{patch_embed.1} parent=0
    #allocation2 [shape = 'u8[4096]{0}', space=vmem, size = 0x1000, scoped, tag = 'output window, operand 0, single buffered']
    #allocation3 [shape = 's32[1]{0}', space=sflag, size = 0x4, scoped, tag = 'scoped memory for patch_embed.1']
    %8 = vsyncpa [#allocation3], 0
    // Predicated region
    $region2: #{patch_embed.1} parent=1 // pred_check
      _
    $region3: #{patch_embed.1} parent=1 // pred_check_branch
      %10 = sbr.rel (0) target = $region5
    $region4: #{patch_embed.1} parent=1 // pred_region
      _
    $region5: #{patch_embed.1} parent=1 // pred_fallthru
      _
    // Predicated region
    $region6: #{patch_embed.1} parent=1 // pred_check
      _
    $region7: #{patch_embed.1} parent=1 // pred_check_branch
      %12 = sbr.rel (0) target = $region9
    $region8: #{patch_embed.1} parent=1 // pred_region
      _
    $region9: #{patch_embed.1} parent=1 // pred_fallthru
      _
    // Predicated region
    $region10: #{patch_embed.1} parent=1 // pred_check
      _
    $region11: #{patch_embed.1} parent=1 // pred_check_branch
      %14 = sbr.rel (0) target = $region13
    $region12: #{patch_embed.1} parent=1 // pred_region
      _
    $region13: #{patch_embed.1} parent=1 // pred_fallthru
      _
    %v15 = vld [vmem:[%s0] sm:$0xff]
    %v16 = vld [vmem:[%s1] sm:$0xff]
    %v17 = vld [vmem:[%s1 + $0x8] sm:$0xff]
    %v18 = vld [vmem:[%s2] sm:$0x1]
    %v20 = vperm.slane %v18, 0
    %vm22 = vcmask 130048
    %v24 = vsel %vm22, %v15, 0
    %26 = vmatpush.msra.mxu0 0.0
    %27 = vmatpush.msra.mxu0 0.0
    %28 = vmatpush.msra.mxu0 0.0
    %29 = vmatpush.msra.mxu0 0.0
    %30 = vmatpush.msra.mxu0 0.0
    %31 = vmatpush.msra.mxu0 0.0
    %32 = vmatpush.msra.mxu0 0.0
    %33 = vmatpush.msra.mxu0 0.0
    %34 = vmatpush.msra.mxu0 0.0
    %35 = vmatpush.msra.mxu0 0.0
    %36 = vmatpush.msra.mxu0 0.0
    %37 = vmatpush.msra.mxu0 0.0
    %38 = vmatpush.msra.mxu0 0.0
    %39 = vmatpush.msra.mxu0 0.0
    %40 = vmatpush.msra.mxu0 %v17
    %41 = vmatpush.msra.mxu0 %v16
    %42 = vmatmul.f32.gmra.mxu0 %v24
    %v43 = vpop.f32.mrf.mxu0
    %v44 = vadd.f32 %v20, %v43
    %45 = vdwg.mxu0
    %vm46 = vcmask 261120
    %47 = vst.msk [vmem:[#allocation2] sm:$0xff] %vm46, %v44
    // Predicated region
    $region14: #{patch_embed.1} parent=1 // pred_check
      _
    $region15: #{patch_embed.1} parent=1 // pred_check_branch
      %49 = sbr.rel (0) target = $region17
    $region16: #{patch_embed.1} parent=1 // pred_region
      %51 = vsyncadd [#allocation3], 0
      %s53 = sshll.u32 [#allocation2], 4
      %s54 = int_to_ptr.vmem [resolvable:$true] %s53
      %s55 = sshll.u32 %s3, 4
      %s56 = int_to_ptr.hbm [resolvable:$true] %s55
      %58 = dma.vmem_to_hbm [thread:$0]  %s54, 128, %s56, [#allocation3]
    $region17: #{patch_embed.1} parent=1 // pred_fallthru
      _
    // Predicated region
    $region18: #{patch_embed.1} parent=1 // pred_check
      _
    $region19: #{patch_embed.1} parent=1 // pred_check_branch
      %60 = sbr.rel (0) target = $region21
    $region20: #{patch_embed.1} parent=1 // pred_region
      %62 = dma.done [#allocation3], 128
    $region21: #{patch_embed.1} parent=1 // pred_fallthru
      _
    %63 = vsyncpa [#allocation3], 1

</llo_original>
